<compile_context>
chip_gen: v6e
topology: v6e:2x2x1
jax: 0.10.0
libtpu: 0.0.40
codegen_flags: <defaults>
</compile_context>

<pallas_src>
import functools

import jax
import jax.numpy as jnp
from jax.experimental import pallas as pl
from jax.experimental.pallas import tpu as pltpu

_LANES = 128


def _round_up(x, m):
    return ((x + m - 1) // m) * m


def _make_mlp_kernel(num_linear_layers):
    """Feature-major MLP kernel.

    Activations are (features, TB) with the batch in the 128-lane axis;
    weights are torch-order (out_features, in_features); biases are (out, 1)
    and broadcast over the lane axis.  tanh between layers, identity on the
    last (matches ptu.build_mlp).
    """

    def kernel(*refs):
        obs_ref = refs[0]
        wb_refs = refs[1:1 + 2 * num_linear_layers]
        mean_ref = refs[-1]

        x = obs_ref[...]                              # (ob_dim, TB) bf16/f32
        for li in range(num_linear_layers):
            w = wb_refs[2 * li][...]                  # (out, in)  matmul dtype
            b = wb_refs[2 * li + 1][...]              # (out, 1)   f32
            y = jnp.dot(w, x, preferred_element_type=jnp.float32) + b
            if li < num_linear_layers - 1:
                x = jnp.tanh(y).astype(w.dtype)       # lane-dense tanh on EUP
            else:
                x = y                                 # identity output layer
        mean_ref[...] = x.astype(mean_ref.dtype)      # lane-dense store

    return kernel


def _choose_batch_tile(batch, batch_tile):
    """Pick a legal batch tile for the lane axis.

    A tile is legal iff it is a multiple of 128 (partial edge blocks cover a
    non-divisible tail) or equal to the full batch (full-extent block).
    """
    if batch % _LANES == 0:
        tb = min(_round_up(batch_tile, _LANES), batch)
        # v7x has 2 TensorCores: keep >= 2 grid steps when the batch allows it
        # so dimension_semantics=("parallel",) can shard them across cores.
        if tb == batch and batch >= 2 * _LANES:
            tb = _round_up(batch // 2, _LANES)
        return tb
    if batch <= batch_tile:
        return batch                              # single full-extent block
    return _round_up(batch_tile, _LANES)          # partial edge block for tail


@functools.partial(jax.jit, static_argnames=("batch_tile", "use_bf16"))
def mlp_policy_forward(obs, params, *, batch_tile=16384, use_bf16=True):
    """Returns (mean, std) of the Normal action distribution.

    mean: (batch, ac_dim) float32.
    std:  (ac_dim,) float32 = exp(logstd); broadcasts over batch like the
          torch.distributions.Normal scale.
    """
    *wb, logstd = params                 # wb = [W1, b1, W2, b2, ..., WL, bL]
    num_linear = len(wb) // 2
    batch, ob_dim = obs.shape
    ac_dim = wb[-2].shape[0]             # torch layout: W is (out, in)

    mm_dtype = jnp.bfloat16 if use_bf16 else jnp.float32

    # Feature-major / batch-in-lanes: obs -> (ob_dim, batch), cast once.
    obs_t = obs.T.astype(mm_dtype)

    wb_c = [t.astype(mm_dtype) if i % 2 == 0 else t.astype(jnp.float32)
            for i, t in enumerate(wb)]

    tb = _choose_batch_tile(batch, batch_tile)
    grid = (pl.cdiv(batch, tb),)

    obs_spec = pl.BlockSpec((ob_dim, tb), lambda i: (0, i))
    # Weights/biases: full-extent blocks, constant index -> VMEM-resident.
    wb_specs = [pl.BlockSpec(t.shape, lambda i: (0, 0)) for t in wb_c]
    out_spec = pl.BlockSpec((ac_dim, tb), lambda i: (0, i))

    mean_t = pl.pallas_call(
        _make_mlp_kernel(num_linear),
        out_shape=jax.ShapeDtypeStruct((ac_dim, batch), jnp.float32),
        grid=grid,
        in_specs=[obs_spec] + wb_specs,
        out_specs=out_spec,
        compiler_params=pltpu.CompilerParams(
            # Shard batch tiles across TensorCores on v7x (no-op on v5e/v6e).
            dimension_semantics=("parallel",),
            # ~8-10 MiB actually used at TB=16384; 32 MiB is within the default
            # or physical limits of v5e (128), v6e (128) and v7x (64) alike.
            vmem_limit_bytes=32 * 1024 * 1024,
        ),
    )(obs_t, *wb_c)

    mean = mean_t.T                                   # (batch, ac_dim) f32
    std = jnp.exp(logstd.astype(jnp.float32))         # (ac_dim,), obs-independent
    return mean, std


def init_params(key, ob_dim, ac_dim, n_layers, size):
    """Deterministic synthetic init; torch layout W:(out,in), b:(out,1)."""
    dims = [ob_dim] + [size] * n_layers + [ac_dim]
    n_lin = len(dims) - 1
    keys = jax.random.split(key, 2 * n_lin)
    wb = []
    for li, (din, dout) in enumerate(zip(dims[:-1], dims[1:])):
        wb.append(jax.random.normal(keys[2 * li], (dout, din), jnp.float32) * 0.1)
        wb.append(jax.random.normal(keys[2 * li + 1], (dout, 1), jnp.float32) * 0.05)
    logstd = jnp.zeros((ac_dim,), jnp.float32)   # nn.Parameter(torch.zeros(ac_dim))
    return tuple(wb) + (logstd,)


def _reference_forward(obs, params, *, use_bf16=True):
    """Pure-JAX reference mirroring the kernel's layout and dtype handling."""
    *wb, logstd = params
    num_linear = len(wb) // 2
    mm_dtype = jnp.bfloat16 if use_bf16 else jnp.float32
    x = obs.T.astype(mm_dtype)                        # (ob_dim, batch)
    for li in range(num_linear):
        w = wb[2 * li].astype(mm_dtype)
        b = wb[2 * li + 1].astype(jnp.float32)
        y = jnp.dot(w, x, preferred_element_type=jnp.float32) + b
        if li < num_linear - 1:
            x = jnp.tanh(y).astype(mm_dtype)
        else:
            x = y
    mean = x.T.astype(jnp.float32)
    std = jnp.exp(logstd.astype(jnp.float32))
    return mean, std


if __name__ == "__main__":
    # Small shapes consistent with the module: obs (batch, ob_dim).
    batch, ob_dim, ac_dim, n_layers, size = 8, 16, 4, 2, 32

    key = jax.random.PRNGKey(0)
    k_obs, k_params = jax.random.split(key)
    obs = jax.random.normal(k_obs, (batch, ob_dim), jnp.float32)
    params = init_params(k_params, ob_dim, ac_dim, n_layers, size)

    # 1) Tiny batch (single full-extent block).
    mean, std = mlp_policy_forward(obs, params)
    jax.block_until_ready((mean, std))
    ref_mean, ref_std = _reference_forward(obs, params)
    assert mean.shape == (batch, ac_dim) and std.shape == (ac_dim,)
    assert jnp.allclose(mean, ref_mean, atol=1e-3, rtol=1e-3), "mean mismatch"
    assert jnp.allclose(std, ref_std, atol=1e-6, rtol=1e-6), "std mismatch"

    # 2) Batch not divisible by 8 (full-extent block, no padding needed).
    obs2 = jax.random.normal(jax.random.PRNGKey(1), (12, ob_dim), jnp.float32)
    mean2, _ = mlp_policy_forward(obs2, params)
    jax.block_until_ready(mean2)
    ref_mean2, _ = _reference_forward(obs2, params)
    assert mean2.shape == (12, ac_dim)
    assert jnp.allclose(mean2, ref_mean2, atol=1e-3, rtol=1e-3), "mean2 mismatch"

    # 3) Multi-step grid with a partial edge block (batch=200, TB=128).
    obs3 = jax.random.normal(jax.random.PRNGKey(2), (200, ob_dim), jnp.float32)
    mean3, _ = mlp_policy_forward(obs3, params, batch_tile=128)
    jax.block_until_ready(mean3)
    ref_mean3, _ = _reference_forward(obs3, params)
    assert mean3.shape == (200, ac_dim)
    assert jnp.allclose(mean3, ref_mean3, atol=1e-3, rtol=1e-3), "mean3 mismatch"

    # 4) Full-f32 path (bit-faithful to a float32 PyTorch MLPPolicy).
    mean4, _ = mlp_policy_forward(obs, params, use_bf16=False)
    jax.block_until_ready(mean4)
    ref_mean4, _ = _reference_forward(obs, params, use_bf16=False)
    assert jnp.allclose(mean4, ref_mean4, atol=1e-5, rtol=1e-5), "f32 mean mismatch"

    # TODO(synk): discrete branch (Categorical over logits) is the same MLP
    # minus logstd/std; not exercised here since discrete=False.
    # TODO(synk): torch.distributions.Normal construction/.sample() has no
    # Pallas equivalent; a fused sampler using pltpu.prng_seed/prng_random_bits
    # could emit actions directly if the caller only needs samples.
    print("KERNEL_OK")
</pallas_src>

<mosaic_0001>
module attributes {stable_mosaic.version = 11 : i64} {
  func.func @kernel(%arg0: i32, %arg1: memref<16x8xbf16, #tpu.memory_space<vmem>>, %arg2: memref<32x16xbf16, #tpu.memory_space<vmem>>, %arg3: memref<32x1xf32, #tpu.memory_space<vmem>>, %arg4: memref<32x32xbf16, #tpu.memory_space<vmem>>, %arg5: memref<32x1xf32, #tpu.memory_space<vmem>>, %arg6: memref<4x32xbf16, #tpu.memory_space<vmem>>, %arg7: memref<4x1xf32, #tpu.memory_space<vmem>>, %arg8: memref<4x8xf32, #tpu.memory_space<vmem>>) attributes {dimension_semantics = [#tpu.dimension_semantics<parallel>], iteration_bounds = array<i64: 1>, scalar_prefetch = 0 : i64, scratch_operands = 0 : i64, tpu.core_type = #tpu.core_type<tc>, window_params = [{transform_indices = @transform_0, window_bounds = array<i64: 16, 8>}, {pipeline_mode = #tpu.pipeline_mode<synchronous>, transform_indices = @transform_1, window_bounds = array<i64: 32, 16>}, {pipeline_mode = #tpu.pipeline_mode<synchronous>, transform_indices = @transform_2, window_bounds = array<i64: 32, 1>}, {pipeline_mode = #tpu.pipeline_mode<synchronous>, transform_indices = @transform_3, window_bounds = array<i64: 32, 32>}, {pipeline_mode = #tpu.pipeline_mode<synchronous>, transform_indices = @transform_4, window_bounds = array<i64: 32, 1>}, {pipeline_mode = #tpu.pipeline_mode<synchronous>, transform_indices = @transform_5, window_bounds = array<i64: 4, 32>}, {pipeline_mode = #tpu.pipeline_mode<synchronous>, transform_indices = @transform_6, window_bounds = array<i64: 4, 1>}, {transform_indices = @transform_7, window_bounds = array<i64: 4, 8>}]} {
    %c0 = arith.constant 0 : index
    %c0_0 = arith.constant 0 : index
    %0 = vector.load %arg1[%c0, %c0_0] : memref<16x8xbf16, #tpu.memory_space<vmem>>, vector<16x8xbf16>
    %c0_1 = arith.constant 0 : index
    %c0_2 = arith.constant 0 : index
    %1 = vector.load %arg2[%c0_1, %c0_2] : memref<32x16xbf16, #tpu.memory_space<vmem>>, vector<32x16xbf16>
    %c0_3 = arith.constant 0 : index
    %c0_4 = arith.constant 0 : index
    %2 = vector.load %arg3[%c0_3, %c0_4] : memref<32x1xf32, #tpu.memory_space<vmem>>, vector<32x1xf32>
    %cst = arith.constant dense<0.000000e+00> : vector<32x8xf32>
    %3 = tpu.matmul %1, %0, %cst {dimension_numbers = #tpu.dot_dimension_numbers<[1], [0], [0], [1], [0, 0, 1, 1], [], []>} : vector<32x16xbf16>, vector<16x8xbf16>, vector<32x8xf32> -> vector<32x8xf32>
    %4 = vector.broadcast %2 : vector<32x1xf32> to vector<32x8xf32>
    %5 = arith.addf %3, %4 : vector<32x8xf32>
    %6 = math.tanh %5 : vector<32x8xf32>
    %7 = arith.truncf %6 : vector<32x8xf32> to vector<32x8xbf16>
    %c0_5 = arith.constant 0 : index
    %c0_6 = arith.constant 0 : index
    %8 = vector.load %arg4[%c0_5, %c0_6] : memref<32x32xbf16, #tpu.memory_space<vmem>>, vector<32x32xbf16>
    %c0_7 = arith.constant 0 : index
    %c0_8 = arith.constant 0 : index
    %9 = vector.load %arg5[%c0_7, %c0_8] : memref<32x1xf32, #tpu.memory_space<vmem>>, vector<32x1xf32>
    %cst_9 = arith.constant dense<0.000000e+00> : vector<32x8xf32>
    %10 = tpu.matmul %8, %7, %cst_9 {dimension_numbers = #tpu.dot_dimension_numbers<[1], [0], [0], [1], [0, 0, 1, 1], [], []>} : vector<32x32xbf16>, vector<32x8xbf16>, vector<32x8xf32> -> vector<32x8xf32>
    %11 = vector.broadcast %9 : vector<32x1xf32> to vector<32x8xf32>
    %12 = arith.addf %10, %11 : vector<32x8xf32>
    %13 = math.tanh %12 : vector<32x8xf32>
    %14 = arith.truncf %13 : vector<32x8xf32> to vector<32x8xbf16>
    %c0_10 = arith.constant 0 : index
    %c0_11 = arith.constant 0 : index
    %15 = vector.load %arg6[%c0_10, %c0_11] : memref<4x32xbf16, #tpu.memory_space<vmem>>, vector<4x32xbf16>
    %c0_12 = arith.constant 0 : index
    %c0_13 = arith.constant 0 : index
    %16 = vector.load %arg7[%c0_12, %c0_13] : memref<4x1xf32, #tpu.memory_space<vmem>>, vector<4x1xf32>
    %cst_14 = arith.constant dense<0.000000e+00> : vector<4x8xf32>
    %17 = tpu.matmul %15, %14, %cst_14 {dimension_numbers = #tpu.dot_dimension_numbers<[1], [0], [0], [1], [0, 0, 1, 1], [], []>} : vector<4x32xbf16>, vector<32x8xbf16>, vector<4x8xf32> -> vector<4x8xf32>
    %18 = vector.broadcast %16 : vector<4x1xf32> to vector<4x8xf32>
    %19 = arith.addf %17, %18 : vector<4x8xf32>
    %c0_15 = arith.constant 0 : index
    %c0_16 = arith.constant 0 : index
    %20 = vector.load %arg8[%c0_15, %c0_16] : memref<4x8xf32, #tpu.memory_space<vmem>>, vector<4x8xf32>
    tpu.vector_store %arg8[%c0_15, %c0_16], %19 {strides = array<i32>} : memref<4x8xf32, #tpu.memory_space<vmem>>, vector<4x8xf32>,
    return
  }
  func.func @transform_0(%arg0: i32) -> (i32, i32) {
    %c0_i32 = arith.constant 0 : i32
    %c0_i32_0 = arith.constant 0 : i32
    return %c0_i32, %arg0 : i32, i32
  }
  func.func @transform_1(%arg0: i32) -> (i32, i32) {
    %c0_i32 = arith.constant 0 : i32
    %c0_i32_0 = arith.constant 0 : i32
    %c0_i32_1 = arith.constant 0 : i32
    return %c0_i32, %c0_i32_0 : i32, i32
  }
  func.func @transform_2(%arg0: i32) -> (i32, i32) {
    %c0_i32 = arith.constant 0 : i32
    %c0_i32_0 = arith.constant 0 : i32
    %c0_i32_1 = arith.constant 0 : i32
    return %c0_i32, %c0_i32_0 : i32, i32
  }
  func.func @transform_3(%arg0: i32) -> (i32, i32) {
    %c0_i32 = arith.constant 0 : i32
    %c0_i32_0 = arith.constant 0 : i32
    %c0_i32_1 = arith.constant 0 : i32
    return %c0_i32, %c0_i32_0 : i32, i32
  }
  func.func @transform_4(%arg0: i32) -> (i32, i32) {
    %c0_i32 = arith.constant 0 : i32
    %c0_i32_0 = arith.constant 0 : i32
    %c0_i32_1 = arith.constant 0 : i32
    return %c0_i32, %c0_i32_0 : i32, i32
  }
  func.func @transform_5(%arg0: i32) -> (i32, i32) {
    %c0_i32 = arith.constant 0 : i32
    %c0_i32_0 = arith.constant 0 : i32
    %c0_i32_1 = arith.constant 0 : i32
    return %c0_i32, %c0_i32_0 : i32, i32
  }
  func.func @transform_6(%arg0: i32) -> (i32, i32) {
    %c0_i32 = arith.constant 0 : i32
    %c0_i32_0 = arith.constant 0 : i32
    %c0_i32_1 = arith.constant 0 : i32
    return %c0_i32, %c0_i32_0 : i32, i32
  }
  func.func @transform_7(%arg0: i32) -> (i32, i32) {
    %c0_i32 = arith.constant 0 : i32
    %c0_i32_0 = arith.constant 0 : i32
    return %c0_i32, %arg0 : i32, i32
  }
}

</mosaic_0001>

<llo_original>
// kernel: mlp_policy_forward.1
$region0: #{mlp_policy_forward.1}
  #allocation0 [shape = 'u32[]', space=smem, size = 0x4, offset = 0x4, fixed_abs, tag = 'smem constant byte address 0x4 - core index']
  #allocation1 [shape = 'u32[144,128]{1,0:T(1,128)}', space=vmem, size = 0x12000, scoped, tag = 'internal scratch']
  %s0 = inlined_call_operand.vmem [shape: bf16[16,8], index: 0, kind: input, shape index: {}]
  %s1 = inlined_call_operand.vmem [shape: bf16[32,16], index: 1, kind: input, shape index: {}]
  %s2 = inlined_call_operand.vmem [shape: f32[32,1], index: 2, kind: input, shape index: {}]
  %s3 = inlined_call_operand.vmem [shape: bf16[32,32], index: 3, kind: input, shape index: {}]
  %s4 = inlined_call_operand.vmem [shape: f32[32,1], index: 4, kind: input, shape index: {}]
  %s5 = inlined_call_operand.vmem [shape: bf16[4,32], index: 5, kind: input, shape index: {}]
  %s6 = inlined_call_operand.vmem [shape: f32[4,1], index: 6, kind: input, shape index: {}]
  %s7 = inlined_call_operand.hbm [shape: f32[4,8], index: 7, kind: output, shape index: {}]
  %s8 = sld [smem:[#allocation0]]
  $region38: #{mlp_policy_forward.1} parent=0
    _
  %s10 = ssub.s32 1, %s8
  %s11 = scalar_select 0, %s10, %s8
  $region1: #{mlp_policy_forward.1} parent=0
    #allocation2 [shape = 'u8[2048]{0}', space=vmem, size = 0x800, scoped, tag = 'output window, operand 0, single buffered']
    #allocation3 [shape = 's32[1]{0}', space=sflag, size = 0x4, scoped, tag = 'scoped memory for mlp_policy_forward.1']
    %12 = vsyncpa [#allocation3], 0
    // Predicated region
    $region2: #{mlp_policy_forward.1} parent=1 // pred_check
      _
    $region3: #{mlp_policy_forward.1} parent=1 // pred_check_branch
      %14 = sbr.rel (0) target = $region5
    $region4: #{mlp_policy_forward.1} parent=1 // pred_region
      _
    $region5: #{mlp_policy_forward.1} parent=1 // pred_fallthru
      _
    // Predicated region
    $region6: #{mlp_policy_forward.1} parent=1 // pred_check
      _
    $region7: #{mlp_policy_forward.1} parent=1 // pred_check_branch
      %16 = sbr.rel (0) target = $region9
    $region8: #{mlp_policy_forward.1} parent=1 // pred_region
      _
    $region9: #{mlp_policy_forward.1} parent=1 // pred_fallthru
      _
    // Predicated region
    $region10: #{mlp_policy_forward.1} parent=1 // pred_check
      _
    $region11: #{mlp_policy_forward.1} parent=1 // pred_check_branch
      %18 = sbr.rel (0) target = $region13
    $region12: #{mlp_policy_forward.1} parent=1 // pred_region
      _
    $region13: #{mlp_policy_forward.1} parent=1 // pred_fallthru
      _
    // Predicated region
    $region14: #{mlp_policy_forward.1} parent=1 // pred_check
      _
    $region15: #{mlp_policy_forward.1} parent=1 // pred_check_branch
      %20 = sbr.rel (0) target = $region17
    $region16: #{mlp_policy_forward.1} parent=1 // pred_region
      _
    $region17: #{mlp_policy_forward.1} parent=1 // pred_fallthru
      _
    // Predicated region
    $region18: #{mlp_policy_forward.1} parent=1 // pred_check
      _
    $region19: #{mlp_policy_forward.1} parent=1 // pred_check_branch
      %22 = sbr.rel (0) target = $region21
    $region20: #{mlp_policy_forward.1} parent=1 // pred_region
      _
    $region21: #{mlp_policy_forward.1} parent=1 // pred_fallthru
      _
    // Predicated region
    $region22: #{mlp_policy_forward.1} parent=1 // pred_check
      _
    $region23: #{mlp_policy_forward.1} parent=1 // pred_check_branch
      %24 = sbr.rel (0) target = $region25
    $region24: #{mlp_policy_forward.1} parent=1 // pred_region
      _
    $region25: #{mlp_policy_forward.1} parent=1 // pred_fallthru
      _
    // Predicated region
    $region26: #{mlp_policy_forward.1} parent=1 // pred_check
      _
    $region27: #{mlp_policy_forward.1} parent=1 // pred_check_branch
      %26 = sbr.rel (0) target = $region29
    $region28: #{mlp_policy_forward.1} parent=1 // pred_region
      _
    $region29: #{mlp_policy_forward.1} parent=1 // pred_fallthru
      _
    %v28 = vld [vmem:[%s0] sm:$0xf]
    %v29 = vld [vmem:[%s0 + $0x4] sm:$0xf]
    %v30 = vld [vmem:[%s1] sm:$0xf]
    %v31 = vld [vmem:[%s1 + $0x4] sm:$0xf]
    %v32 = vld [vmem:[%s1 + $0x8] sm:$0xf]
    %v33 = vld [vmem:[%s1 + $0xc] sm:$0xf]
    %v34 = vld [vmem:[%s2] sm:$0xff]
    %v35 = vld [vmem:[%s2 + $0x8] sm:$0xff]
    %v36 = vld [vmem:[%s2 + $0x10] sm:$0xff]
    %v37 = vld [vmem:[%s2 + $0x18] sm:$0xff]
    %39 = vset.pattern.permute.xlu0 0
    %40 = vperm.xlu0 %39, %v34
    %v41 = vpop.permute.xlu0 %40
    %44 = vset.pattern.permute.xlu0 0
    %45 = vperm.xlu0 %44, %v35
    %v46 = vpop.permute.xlu0 %45
    %49 = vset.pattern.permute.xlu0 0
    %50 = vperm.xlu0 %49, %v36
    %v51 = vpop.permute.xlu0 %50
    %54 = vset.pattern.permute.xlu0 0
    %55 = vperm.xlu0 %54, %v37
    %v56 = vpop.permute.xlu0 %55
    %v62 = vunpack.c.l.b16 %v30
    %v63 = vunpack.c.l.b16 %v31
    %v64 = vunpack.c.l.b16 %v32
    %v65 = vunpack.c.l.b16 %v33
    %v66 = vpack.c.b16 %v63, %v62
    %v67 = vpack.c.b16 %v65, %v64
    %v70 = vunpack.c.l.b16 %v28
    %v71 = vunpack.c.l.b16 %v29
    %v72 = vpack.c.b16 %v71, %v70
    %vm74 = vcmask 130048
    %v76 = vsel %vm74, %v66, 0
    %v79 = vsel %vm74, %v67, 0
    %81 = vmatprep.subr.bf16.mxu0 0
    %82 = vmatpush1.bf16.msra.mxu0 0
    %83 = vmatprep.subr.bf16.mxu0 0
    %84 = vmatpush1.bf16.msra.mxu0 0
    %85 = vmatprep.subr.bf16.mxu0 0
    %86 = vmatpush1.bf16.msra.mxu0 0
    %87 = vmatprep.subr.bf16.mxu0 0
    %88 = vmatpush1.bf16.msra.mxu0 0
    %89 = vmatprep.subr.bf16.mxu0 0
    %90 = vmatpush1.bf16.msra.mxu0 0
    %91 = vmatprep.subr.bf16.mxu0 0
    %92 = vmatpush1.bf16.msra.mxu0 0
    %93 = vmatprep.subr.bf16.mxu0 0
    %94 = vmatpush1.bf16.msra.mxu0 0
    %95 = vmatprep.subr.bf16.mxu0 0
    %96 = vmatpush1.bf16.msra.mxu0 %v72
    %97 = vmatprep.subr.bf16.mxu0 0
    %98 = vmatpush2.bf16.msra.mxu0 0
    %99 = vmatprep.subr.bf16.mxu0 0
    %100 = vmatpush2.bf16.msra.mxu0 0
    %101 = vmatprep.subr.bf16.mxu0 0
    %102 = vmatpush2.bf16.msra.mxu0 0
    %103 = vmatprep.subr.bf16.mxu0 0
    %104 = vmatpush2.bf16.msra.mxu0 0
    %105 = vmatprep.subr.bf16.mxu0 0
    %106 = vmatpush2.bf16.msra.mxu0 0
    %107 = vmatprep.subr.bf16.mxu0 0
    %108 = vmatpush2.bf16.msra.mxu0 0
    %109 = vmatprep.subr.bf16.mxu0 0
    %110 = vmatpush2.bf16.msra.mxu0 0
    %111 = vmatprep.subr.bf16.mxu0 0
    %112 = vmatpush2.bf16.msra.mxu0 0
    %113 = vmatprep.mubr.bf16.mxu0 0
    %114 = vmatmul.mubr.bf16.gmra.mxu0 %v76
    %v115 = vpop.f32.mrf.mxu0
    %v116 = vadd.f32 %v41, %v115
    %v117 = vpop.f32.mrf.mxu0
    %v118 = vpop.f32.mrf.mxu0
    %v119 = vadd.f32 %v46, %v118
    %v120 = vpop.f32.mrf.mxu0
    %121 = vmatprep.mubr.bf16.mxu0 0
    %122 = vmatmul.mubr.bf16.gmra.mxu0 %v79
    %v123 = vpop.f32.mrf.mxu0
    %v124 = vadd.f32 %v51, %v123
    %v125 = vpop.f32.mrf.mxu0
    %v126 = vpop.f32.mrf.mxu0
    %v127 = vadd.f32 %v56, %v126
    %v128 = vpop.f32.mrf.mxu0
    %129 = vdwg.mxu0
    %v130 = vtanh.pop %v116
    %v131 = vtanh.pop %v119
    %v132 = vtanh.pop %v124
    %v133 = vtanh.pop %v127
    %v134 = vpack.c.bf16 %v131, %v130
    %v135 = vpack.c.bf16 %v133, %v132
    %v136 = vld [vmem:[%s3] sm:$0xf]
    %v137 = vld [vmem:[%s3 + $0x4] sm:$0xf]
    %v138 = vld [vmem:[%s3 + $0x8] sm:$0xf]
    %v139 = vld [vmem:[%s3 + $0xc] sm:$0xf]
    %v140 = vld [vmem:[%s4] sm:$0xff]
    %v141 = vld [vmem:[%s4 + $0x8] sm:$0xff]
    %v142 = vld [vmem:[%s4 + $0x10] sm:$0xff]
    %v143 = vld [vmem:[%s4 + $0x18] sm:$0xff]
    %145 = vset.pattern.permute.xlu0 0
    %146 = vperm.xlu0 %145, %v140
    %v147 = vpop.permute.xlu0 %146
    %150 = vset.pattern.permute.xlu0 0
    %151 = vperm.xlu0 %150, %v141
    %v152 = vpop.permute.xlu0 %151
    %155 = vset.pattern.permute.xlu0 0
    %156 = vperm.xlu0 %155, %v142
    %v157 = vpop.permute.xlu0 %156
    %160 = vset.pattern.permute.xlu0 0
    %161 = vperm.xlu0 %160, %v143
    %v162 = vpop.permute.xlu0 %161
    %v168 = vunpack.c.l.b16 %v136
    %v169 = vunpack.c.l.b16 %v137
    %v170 = vunpack.c.l.b16 %v138
    %v171 = vunpack.c.l.b16 %v139
    %v172 = vpack.c.b16 %v169, %v168
    %v173 = vpack.c.b16 %v171, %v170
    %vm174 = vcmask 261120
    %v176 = vsel %vm174, %v172, 0
    %v179 = vsel %vm174, %v173, 0
    %181 = vmatprep.subr.bf16.mxu0 0
    %182 = vmatpush1.bf16.msra.mxu0 0
    %183 = vmatprep.subr.bf16.mxu0 0
    %184 = vmatpush1.bf16.msra.mxu0 0
    %185 = vmatprep.subr.bf16.mxu0 0
    %186 = vmatpush1.bf16.msra.mxu0 0
    %187 = vmatprep.subr.bf16.mxu0 0
    %188 = vmatpush1.bf16.msra.mxu0 0
    %189 = vmatprep.subr.bf16.mxu0 0
    %190 = vmatpush1.bf16.msra.mxu0 0
    %191 = vmatprep.subr.bf16.mxu0 0
    %192 = vmatpush1.bf16.msra.mxu0 0
    %193 = vmatprep.subr.bf16.mxu0 0
    %194 = vmatpush1.bf16.msra.mxu0 %v135
    %195 = vmatprep.subr.bf16.mxu0 0
    %196 = vmatpush1.bf16.msra.mxu0 %v134
    %197 = vmatprep.subr.bf16.mxu0 0
    %198 = vmatpush2.bf16.msra.mxu0 0
    %199 = vmatprep.subr.bf16.mxu0 0
    %200 = vmatpush2.bf16.msra.mxu0 0
    %201 = vmatprep.subr.bf16.mxu0 0
    %202 = vmatpush2.bf16.msra.mxu0 0
    %203 = vmatprep.subr.bf16.mxu0 0
    %204 = vmatpush2.bf16.msra.mxu0 0
    %205 = vmatprep.subr.bf16.mxu0 0
    %206 = vmatpush2.bf16.msra.mxu0 0
    %207 = vmatprep.subr.bf16.mxu0 0
    %208 = vmatpush2.bf16.msra.mxu0 0
    %209 = vmatprep.subr.bf16.mxu0 0
    %210 = vmatpush2.bf16.msra.mxu0 0
    %211 = vmatprep.subr.bf16.mxu0 0
    %212 = vmatpush2.bf16.msra.mxu0 0
    %213 = vmatprep.mubr.bf16.mxu0 0
    %214 = vmatmul.mubr.bf16.gmra.mxu0 %v176
    %v215 = vpop.f32.mrf.mxu0
    %v216 = vadd.f32 %v147, %v215
    %v217 = vpop.f32.mrf.mxu0
    %v218 = vpop.f32.mrf.mxu0
    %v219 = vadd.f32 %v152, %v218
    %v220 = vpop.f32.mrf.mxu0
    %221 = vmatprep.mubr.bf16.mxu0 0
    %222 = vmatmul.mubr.bf16.gmra.mxu0 %v179
    %v223 = vpop.f32.mrf.mxu0
    %v224 = vadd.f32 %v157, %v223
    %v225 = vpop.f32.mrf.mxu0
    %v226 = vpop.f32.mrf.mxu0
    %v227 = vadd.f32 %v162, %v226
    %v228 = vpop.f32.mrf.mxu0
    %229 = vdwg.mxu0
    %v230 = vtanh.pop %v216
    %v231 = vtanh.pop %v219
    %v232 = vtanh.pop %v224
    %v233 = vtanh.pop %v227
    %v234 = vpack.c.bf16 %v231, %v230
    %v235 = vpack.c.bf16 %v233, %v232
    %v236 = vld [vmem:[%s5] sm:$0x3]
    %v237 = vld [vmem:[%s6] sm:$0xf]
    %239 = vset.pattern.permute.xlu0 0
    %240 = vperm.xlu0 %239, %v237
    %v241 = vpop.permute.xlu0 %240
    %v244 = vsel %vm174, %v236, 0
    %246 = vmatprep.subr.bf16.mxu0 0
    %247 = vmatpush1.bf16.msra.mxu0 0
    %248 = vmatprep.subr.bf16.mxu0 0
    %249 = vmatpush1.bf16.msra.mxu0 0
    %250 = vmatprep.subr.bf16.mxu0 0
    %251 = vmatpush1.bf16.msra.mxu0 0
    %252 = vmatprep.subr.bf16.mxu0 0
    %253 = vmatpush1.bf16.msra.mxu0 0
    %254 = vmatprep.subr.bf16.mxu0 0
    %255 = vmatpush1.bf16.msra.mxu0 0
    %256 = vmatprep.subr.bf16.mxu0 0
    %257 = vmatpush1.bf16.msra.mxu0 0
    %258 = vmatprep.subr.bf16.mxu0 0
    %259 = vmatpush1.bf16.msra.mxu0 %v235
    %260 = vmatprep.subr.bf16.mxu0 0
    %261 = vmatpush1.bf16.msra.mxu0 %v234
    %262 = vmatprep.subr.bf16.mxu0 0
    %263 = vmatpush2.bf16.msra.mxu0 0
    %264 = vmatprep.subr.bf16.mxu0 0
    %265 = vmatpush2.bf16.msra.mxu0 0
    %266 = vmatprep.subr.bf16.mxu0 0
    %267 = vmatpush2.bf16.msra.mxu0 0
    %268 = vmatprep.subr.bf16.mxu0 0
    %269 = vmatpush2.bf16.msra.mxu0 0
    %270 = vmatprep.subr.bf16.mxu0 0
    %271 = vmatpush2.bf16.msra.mxu0 0
    %272 = vmatprep.subr.bf16.mxu0 0
    %273 = vmatpush2.bf16.msra.mxu0 0
    %274 = vmatprep.subr.bf16.mxu0 0
    %275 = vmatpush2.bf16.msra.mxu0 0
    %276 = vmatprep.subr.bf16.mxu0 0
    %277 = vmatpush2.bf16.msra.mxu0 0
    %278 = vmatprep.mubr.bf16.mxu0 0
    %279 = vmatmul.mubr.bf16.gmra.mxu0 %v244
    %v280 = vpop.f32.mrf.mxu0
    %v281 = vadd.f32 %v241, %v280
    %v282 = vpop.f32.mrf.mxu0
    %v283 = vpop.f32.mrf.mxu0
    %v284 = vpop.f32.mrf.mxu0
    %285 = vdwg.mxu0
    %vm286 = vcmask 60416
    %287 = vst.msk [vmem:[#allocation2] sm:$0xf] %vm286, %v281
    // Predicated region
    $region30: #{mlp_policy_forward.1} parent=1 // pred_check
      _
    $region31: #{mlp_policy_forward.1} parent=1 // pred_check_branch
      %289 = sbr.rel (0) target = $region33
    $region32: #{mlp_policy_forward.1} parent=1 // pred_region
      %s291 = ssub.s32 64, 64
      %292 = vsyncadd [#allocation3], %s291
      %s294 = sshll.u32 [#allocation2], 4
      %s295 = int_to_ptr.vmem [resolvable:$true] %s294
      %297 = dma.vmem_to_hbm [thread:$0]  %s295, 64, %s7, [#allocation3]
    $region33: #{mlp_policy_forward.1} parent=1 // pred_fallthru
      _
    // Predicated region
    $region34: #{mlp_policy_forward.1} parent=1 // pred_check
      _
    $region35: #{mlp_policy_forward.1} parent=1 // pred_check_branch
      %299 = sbr.rel (0) target = $region37
    $region36: #{mlp_policy_forward.1} parent=1 // pred_region
      %300 = dma.done [#allocation3], 64
    $region37: #{mlp_policy_forward.1} parent=1 // pred_fallthru
      _
    %301 = vsyncpa [#allocation3], 1

</llo_original>
